<compile_context>
chip_gen: v6e
topology: v6e:2x2x1
jax: 0.10.0
libtpu: 0.0.40
codegen_flags: <defaults>
</compile_context>

<pallas_src>
import jax
import jax.numpy as jnp
from jax.experimental import pallas as pl
from jax.experimental.pallas import tpu as pltpu


def _mlp_kernel(x_ref, w_ref, out_ref):
    """One grid step: a tile of G rows through the 3-layer MLP.

    x_ref:   (G_TILE, 1)   VMEM  -- per-row scalar inputs x[:, 0]
    w_ref:   (40, 256)     VMEM  -- packed weight slab (resident across grid)
    out_ref: (G_TILE, 128) VMEM  -- lanes 0:40 = softplus output, rest padding
    """
    # Tile-aligned slices of the weight slab (lane offsets 0 / 128 only).
    w2  = w_ref[0:32, 0:32]        # (32, 32)  fc2 weight, [in, out]
    w3p = w_ref[0:32, 128:256]     # (32, 128) fc3 weight, zero-padded lanes 40:
    w1  = w_ref[32:33, 0:32]       # (1, 32)   fc1 weight (in_features = 1)
    b1  = w_ref[33:34, 0:32]       # (1, 32)
    b2  = w_ref[34:35, 0:32]       # (1, 32)
    b3p = w_ref[35:36, 128:256]    # (1, 128)  fc3 bias, zero-padded lanes 40:

    x0 = x_ref[...]                                                   # (G, 1)

    # fc1: Linear(1, 32) -> pure VPU broadcast multiply-add + ReLU.
    h = jnp.maximum(x0 * w1 + b1, 0.0)                                # (G, 32)

    # fc2: Linear(32, 32) + ReLU (MXU).
    h = jnp.dot(h, w2, preferred_element_type=jnp.float32) + b2
    h = jnp.maximum(h, 0.0)                                           # (G, 32)

    # fc3: Linear(32, 40) padded to 128 output lanes (same single MXU pass).
    h = jnp.dot(h, w3p, preferred_element_type=jnp.float32) + b3p     # (G, 128)

    # Softplus (PyTorch default: beta=1, threshold=20 -> linear above 20).
    # exp overflow to inf in the h>20 branch is masked by the where.
    out_ref[...] = jnp.where(h > 20.0, h, jnp.log1p(jnp.exp(h)))


def pack_params(params):
    """Coalesce the 6 operands into one tile-aligned (40, 256) slab.

    Layout (all [in, out]):
      rows 0:32,  lanes   0:32  -> fc2 weight (32, 32)
      rows 0:32,  lanes 128:168 -> fc3 weight (32, 40)   (lanes 168:256 zero)
      row  32,    lanes   0:32  -> fc1 weight (1, 32)
      row  33,    lanes   0:32  -> fc1 bias
      row  34,    lanes   0:32  -> fc2 bias
      row  35,    lanes 128:168 -> fc3 bias              (lanes 168:256 zero)
    Do this once and reuse the slab for every forward call.
    """
    w1, b1, w2, b2, w3, b3 = params
    slab = jnp.zeros((40, 256), jnp.float32)
    slab = slab.at[0:32, 0:32].set(w2)
    slab = slab.at[0:32, 128:168].set(w3)
    slab = slab.at[32, 0:32].set(w1[0])
    slab = slab.at[33, 0:32].set(b1[0])
    slab = slab.at[34, 0:32].set(b2[0])
    slab = slab.at[35, 128:168].set(b3[0])
    return slab


def condition_network_batched(x_col, weight_slab, *, g_tile_max=256):
    """Evaluate the MLP for a whole column of scalars.

    x_col: (B, 1) float32 (= x[:, 0:1]).  Returns y: (B, 40) float32.
    g_tile_max=256 fills the v7x/v6e MXU; 128 already saturates v5e.  VMEM per
    step at 256 rows is ~170 KiB -- far under every generation's scoped limit.
    """
    B = x_col.shape[0]
    b_pad = max(8, -(-B // 8) * 8)               # sublane-align the batch
    g_tile = min(g_tile_max, b_pad)
    b_pad = -(-b_pad // g_tile) * g_tile         # pad batch to grid multiple
    xp = jnp.zeros((b_pad, 1), jnp.float32).at[:B].set(x_col.astype(jnp.float32))

    y = pl.pallas_call(
        _mlp_kernel,
        out_shape=jax.ShapeDtypeStruct((b_pad, 128), jnp.float32),
        grid_spec=pltpu.PrefetchScalarGridSpec(
            num_scalar_prefetch=0,
            grid=(b_pad // g_tile,),
            in_specs=[
                pl.BlockSpec((g_tile, 1), lambda g: (g, 0)),   # x scalars tile
                pl.BlockSpec((40, 256), lambda g: (0, 0)),     # resident weights
            ],
            out_specs=pl.BlockSpec((g_tile, 128), lambda g: (g, 0)),
        ),
        compiler_params=pltpu.CompilerParams(
            dimension_semantics=("parallel",)),  # shard G across TCs on v7x
    )(xp, weight_slab)

    return y[:B, 0:40]


def condition_network_forward(x, weight_slab):
    """Module-semantics forward. x: (B, F) float32.

    Returns (y[0, 0:20], y[0, 20:40]), exactly as the PyTorch module (which
    evaluates the full batch and returns only row 0's two halves).
    """
    y = condition_network_batched(x[:, 0:1], weight_slab)
    return y[0, 0:20], y[0, 20:40]


def init_params(key):
    """Deterministic init matching nn.Linear(1,32)/(32,32)/(32,40) shapes,
    stored as [in, out]."""
    k1, k2, k3, k4, k5, k6 = jax.random.split(key, 6)

    def uinit(k, shape, fan_in):
        bound = 1.0 / jnp.sqrt(jnp.float32(fan_in))
        return jax.random.uniform(k, shape, jnp.float32, -bound, bound)

    w1 = uinit(k1, (1, 32), 1)
    b1 = uinit(k2, (1, 32), 1)
    w2 = uinit(k3, (32, 32), 32)
    b2 = uinit(k4, (1, 32), 32)
    w3 = uinit(k5, (32, 40), 32)
    b3 = uinit(k6, (1, 40), 32)
    return (w1, b1, w2, b2, w3, b3)


def _reference_forward(x, params):
    """Plain-JAX reference mirroring the PyTorch module."""
    w1, b1, w2, b2, w3, b3 = params
    h = x[:, 0:1] * w1 + b1
    h = jnp.maximum(h, 0.0)
    h = h @ w2 + b2
    h = jnp.maximum(h, 0.0)
    h = h @ w3 + b3
    y = jnp.where(h > 20.0, h, jnp.log1p(jnp.exp(jnp.minimum(h, 20.0))))
    return y


if __name__ == "__main__":
    key = jax.random.PRNGKey(0)
    kx, kp = jax.random.split(key)

    # Small input consistent with the module: batch=2, features=4.
    x = jax.random.normal(kx, (2, 4), dtype=jnp.float32)
    params = init_params(kp)
    slab = pack_params(params)

    # Batched path (all rows) + module-semantics return values.
    y_all = condition_network_batched(x[:, 0:1], slab)
    out_a, out_b = condition_network_forward(x, slab)
    jax.block_until_ready((y_all, out_a, out_b))

    y_ref = _reference_forward(x, params)
    assert y_all.shape == (2, 40)
    assert out_a.shape == (20,) and out_b.shape == (20,)
    assert jnp.allclose(y_all, y_ref, atol=1e-5, rtol=1e-5)
    assert jnp.allclose(out_a, y_ref[0, 0:20], atol=1e-5, rtol=1e-5)
    assert jnp.allclose(out_b, y_ref[0, 20:40], atol=1e-5, rtol=1e-5)

    print("KERNEL_OK")
</pallas_src>

<mosaic_0001>
module attributes {stable_mosaic.version = 11 : i64} {
  func.func @_mlp_kernel(%arg0: i32, %arg1: memref<8x1xf32, #tpu.memory_space<vmem>>, %arg2: memref<40x256xf32, #tpu.memory_space<vmem>>, %arg3: memref<8x128xf32, #tpu.memory_space<vmem>>) attributes {dimension_semantics = [#tpu.dimension_semantics<parallel>], iteration_bounds = array<i64: 1>, scalar_prefetch = 0 : i64, scratch_operands = 0 : i64, tpu.core_type = #tpu.core_type<tc>, window_params = [{transform_indices = @transform_0, window_bounds = array<i64: 8, 1>}, {pipeline_mode = #tpu.pipeline_mode<synchronous>, transform_indices = @transform_1, window_bounds = array<i64: 40, 256>}, {transform_indices = @transform_2, window_bounds = array<i64: 8, 128>}]} {
    %c0 = arith.constant 0 : index
    %c0_0 = arith.constant 0 : index
    %0 = vector.load %arg2[%c0, %c0_0] : memref<40x256xf32, #tpu.memory_space<vmem>>, vector<32x32xf32>
    %c0_1 = arith.constant 0 : index
    %c128 = arith.constant 128 : index
    %1 = vector.load %arg2[%c0_1, %c128] : memref<40x256xf32, #tpu.memory_space<vmem>>, vector<32x128xf32>
    %c32 = arith.constant 32 : index
    %c0_2 = arith.constant 0 : index
    %2 = vector.load %arg2[%c32, %c0_2] : memref<40x256xf32, #tpu.memory_space<vmem>>, vector<1x32xf32>
    %c33 = arith.constant 33 : index
    %c0_3 = arith.constant 0 : index
    %3 = vector.load %arg2[%c33, %c0_3] : memref<40x256xf32, #tpu.memory_space<vmem>>, vector<1x32xf32>
    %c34 = arith.constant 34 : index
    %c0_4 = arith.constant 0 : index
    %4 = vector.load %arg2[%c34, %c0_4] : memref<40x256xf32, #tpu.memory_space<vmem>>, vector<1x32xf32>
    %c35 = arith.constant 35 : index
    %c128_5 = arith.constant 128 : index
    %5 = vector.load %arg2[%c35, %c128_5] : memref<40x256xf32, #tpu.memory_space<vmem>>, vector<1x128xf32>
    %c0_6 = arith.constant 0 : index
    %c0_7 = arith.constant 0 : index
    %6 = vector.load %arg1[%c0_6, %c0_7] : memref<8x1xf32, #tpu.memory_space<vmem>>, vector<8x1xf32>
    %7 = vector.broadcast %6 : vector<8x1xf32> to vector<8x32xf32>
    %8 = vector.broadcast %2 : vector<1x32xf32> to vector<8x32xf32>
    %9 = arith.mulf %7, %8 : vector<8x32xf32>
    %10 = vector.broadcast %3 : vector<1x32xf32> to vector<8x32xf32>
    %11 = arith.addf %9, %10 : vector<8x32xf32>
    %cst = arith.constant 0.000000e+00 : f32
    %12 = vector.broadcast %cst : f32 to vector<8x32xf32>
    %13 = arith.maximumf %11, %12 : vector<8x32xf32>
    %cst_8 = arith.constant dense<0.000000e+00> : vector<8x32xf32>
    %14 = tpu.matmul %13, %0, %cst_8 {dimension_numbers = #tpu.dot_dimension_numbers<[1], [0], [0], [1], [0, 0, 1, 1], [], []>} : vector<8x32xf32>, vector<32x32xf32>, vector<8x32xf32> -> vector<8x32xf32>
    %15 = vector.broadcast %4 : vector<1x32xf32> to vector<8x32xf32>
    %16 = arith.addf %14, %15 : vector<8x32xf32>
    %cst_9 = arith.constant 0.000000e+00 : f32
    %17 = vector.broadcast %cst_9 : f32 to vector<8x32xf32>
    %18 = arith.maximumf %16, %17 : vector<8x32xf32>
    %cst_10 = arith.constant dense<0.000000e+00> : vector<8x128xf32>
    %19 = tpu.matmul %18, %1, %cst_10 {dimension_numbers = #tpu.dot_dimension_numbers<[1], [0], [0], [1], [0, 0, 1, 1], [], []>} : vector<8x32xf32>, vector<32x128xf32>, vector<8x128xf32> -> vector<8x128xf32>
    %20 = vector.broadcast %5 : vector<1x128xf32> to vector<8x128xf32>
    %21 = arith.addf %19, %20 : vector<8x128xf32>
    %cst_11 = arith.constant 2.000000e+01 : f32
    %22 = vector.broadcast %cst_11 : f32 to vector<8x128xf32>
    %23 = arith.cmpf ogt, %21, %22 : vector<8x128xf32>
    %24 = math.exp %21 : vector<8x128xf32>
    %25 = math.log1p %24 : vector<8x128xf32>
    %26 = arith.select %23, %21, %25 : vector<8x128xi1>, vector<8x128xf32>
    %c0_12 = arith.constant 0 : index
    %c0_13 = arith.constant 0 : index
    %27 = vector.load %arg3[%c0_12, %c0_13] : memref<8x128xf32, #tpu.memory_space<vmem>>, vector<8x128xf32>
    tpu.vector_store %arg3[%c0_12, %c0_13], %26 {strides = array<i32>} : memref<8x128xf32, #tpu.memory_space<vmem>>, vector<8x128xf32>,
    return
  }
  func.func @transform_0(%arg0: i32) -> (i32, i32) {
    %c0_i32 = arith.constant 0 : i32
    %c0_i32_0 = arith.constant 0 : i32
    return %arg0, %c0_i32 : i32, i32
  }
  func.func @transform_1(%arg0: i32) -> (i32, i32) {
    %c0_i32 = arith.constant 0 : i32
    %c0_i32_0 = arith.constant 0 : i32
    %c0_i32_1 = arith.constant 0 : i32
    return %c0_i32, %c0_i32_0 : i32, i32
  }
  func.func @transform_2(%arg0: i32) -> (i32, i32) {
    %c0_i32 = arith.constant 0 : i32
    %c0_i32_0 = arith.constant 0 : i32
    return %arg0, %c0_i32 : i32, i32
  }
}

</mosaic_0001>

<llo_original>
// kernel: tpu_custom_call.1
$region0: #{tpu_custom_call.1}
  #allocation0 [shape = 'u32[]', space=smem, size = 0x4, offset = 0x4, fixed_abs, tag = 'smem constant byte address 0x4 - core index']
  #allocation1 [shape = 'u32[144,128]{1,0:T(1,128)}', space=vmem, size = 0x12000, scoped, tag = 'internal scratch']
  %s0 = inlined_call_operand.vmem [shape: f32[8,1], index: 0, kind: input, shape index: {}]
  %s1 = inlined_call_operand.hbm [shape: f32[40,256], index: 1, kind: input, shape index: {}]
  %s2 = inlined_call_operand.hbm [shape: f32[8,128], index: 2, kind: output, shape index: {}]
  %s3 = sld [smem:[#allocation0]]
  $region22: #{tpu_custom_call.1} parent=0
    _
  %s5 = ssub.s32 1, %s3
  %s6 = scalar_select 0, %s5, %s3
  $region1: #{tpu_custom_call.1} parent=0
    #allocation2 [shape = 'u8[40960]{0}', space=vmem, size = 0xa000, scoped, tag = 'input window, operand 1, single buffered']
    #allocation3 [shape = 's32[1]{0}', space=sflag, size = 0x4, scoped, tag = 'scoped memory for tpu_custom_call.1']
    #allocation4 [shape = 's32[1]{0}', space=sflag, size = 0x4, scoped, tag = 'scoped memory for tpu_custom_call.1']
    #allocation5 [shape = 'u8[4096]{0}', space=vmem, size = 0x1000, scoped, tag = 'output window, operand 0, single buffered']
    %7 = vsyncpa [#allocation3], 0
    %8 = vsyncpa [#allocation4], 0
    // Predicated region
    $region2: #{tpu_custom_call.1} parent=1 // pred_check
      _
    $region3: #{tpu_custom_call.1} parent=1 // pred_check_branch
      %10 = sbr.rel (0) target = $region5
    $region4: #{tpu_custom_call.1} parent=1 // pred_region
      _
    $region5: #{tpu_custom_call.1} parent=1 // pred_fallthru
      _
    // Predicated region
    $region6: #{tpu_custom_call.1} parent=1 // pred_check
      _
    $region7: #{tpu_custom_call.1} parent=1 // pred_check_branch
      %12 = sbr.rel (0) target = $region9
    $region8: #{tpu_custom_call.1} parent=1 // pred_region
      %s14 = ssub.s32 1280, 1280
      %15 = vsyncadd [#allocation3], %s14
      %s16 = sshll.u32 [#allocation2], 4
      %s17 = int_to_ptr.vmem [resolvable:$true] %s16
      %22 = dma.hbm_to_vmem [thread:$0]  %s1, 1280, %s17, [#allocation3], 256, 256, 16
    $region9: #{tpu_custom_call.1} parent=1 // pred_fallthru
      _
    // Predicated region
    $region10: #{tpu_custom_call.1} parent=1 // pred_check
      _
    $region11: #{tpu_custom_call.1} parent=1 // pred_check_branch
      %24 = sbr.rel (0) target = $region13
    $region12: #{tpu_custom_call.1} parent=1 // pred_region
      %25 = dma.done [#allocation3], 1280
    $region13: #{tpu_custom_call.1} parent=1 // pred_fallthru
      _
    %v26 = vld [vmem:[#allocation2] sm:$0xff]
    %v27 = vld [vmem:[#allocation2 + $0x10] sm:$0xff]
    %v28 = vld [vmem:[#allocation2 + $0x20] sm:$0xff]
    %v29 = vld [vmem:[#allocation2 + $0x30] sm:$0xff]
    %v30 = vld [vmem:[#allocation2 + $0x8] sm:$0xff]
    %v31 = vld [vmem:[#allocation2 + $0x18] sm:$0xff]
    %v32 = vld [vmem:[#allocation2 + $0x28] sm:$0xff]
    %v33 = vld [vmem:[#allocation2 + $0x38] sm:$0xff]
    %v34 = vld [vmem:[#allocation2 + $0x40] ss:$0 sm:$0xff]
    %v35 = vld [vmem:[#allocation2 + $0x41] ss:$0 sm:$0xff]
    %v36 = vld [vmem:[#allocation2 + $0x42] ss:$0 sm:$0xff]
    %v37 = vld [vmem:[#allocation2 + $0x4b] ss:$0 sm:$0xff]
    %v38 = vld [vmem:[%s0] sm:$0xff]
    %40 = vset.pattern.permute.xlu0 0
    %41 = vperm.xlu0 %40, %v38
    %v42 = vpop.permute.xlu0 %41
    %v44 = vmul.f32 %v42, %v34
    %v45 = vadd.f32 %v44, %v35
    %v46 = vmax.f32 %v45, 0.0
    %vm47 = vcmask 261120
    %v49 = vsel %vm47, %v46, 0
    %51 = vmatprep.subr.mxu0 0.0
    %52 = vmatpush1.msra.mxu0 0.0
    %53 = vmatprep.subr.mxu0 0.0
    %54 = vmatpush1.msra.mxu0 0.0
    %55 = vmatprep.subr.mxu0 0.0
    %56 = vmatpush1.msra.mxu0 0.0
    %57 = vmatprep.subr.mxu0 0.0
    %58 = vmatpush1.msra.mxu0 0.0
    %59 = vmatprep.subr.mxu0 0.0
    %60 = vmatpush1.msra.mxu0 0.0
    %61 = vmatprep.subr.mxu0 0.0
    %62 = vmatpush1.msra.mxu0 0.0
    %63 = vmatprep.subr.mxu0 0.0
    %64 = vmatpush1.msra.mxu0 0.0
    %65 = vmatprep.subr.mxu0 0.0
    %66 = vmatpush1.msra.mxu0 0.0
    %67 = vmatprep.subr.mxu0 0.0
    %68 = vmatpush1.msra.mxu0 0.0
    %69 = vmatprep.subr.mxu0 0.0
    %70 = vmatpush1.msra.mxu0 0.0
    %71 = vmatprep.subr.mxu0 0.0
    %72 = vmatpush1.msra.mxu0 0.0
    %73 = vmatprep.subr.mxu0 0.0
    %74 = vmatpush1.msra.mxu0 0.0
    %75 = vmatprep.subr.mxu0 0.0
    %76 = vmatpush1.msra.mxu0 %v29
    %77 = vmatprep.subr.mxu0 0.0
    %78 = vmatpush1.msra.mxu0 %v28
    %79 = vmatprep.subr.mxu0 0.0
    %80 = vmatpush1.msra.mxu0 %v27
    %81 = vmatprep.subr.mxu0 0.0
    %82 = vmatpush1.msra.mxu0 %v26
    %83 = vmatprep.subr.mxu0 0.0
    %84 = vmatpush2.msra.mxu0 0.0
    %85 = vmatprep.subr.mxu0 0.0
    %86 = vmatpush2.msra.mxu0 0.0
    %87 = vmatprep.subr.mxu0 0.0
    %88 = vmatpush2.msra.mxu0 0.0
    %89 = vmatprep.subr.mxu0 0.0
    %90 = vmatpush2.msra.mxu0 0.0
    %91 = vmatprep.subr.mxu0 0.0
    %92 = vmatpush2.msra.mxu0 0.0
    %93 = vmatprep.subr.mxu0 0.0
    %94 = vmatpush2.msra.mxu0 0.0
    %95 = vmatprep.subr.mxu0 0.0
    %96 = vmatpush2.msra.mxu0 0.0
    %97 = vmatprep.subr.mxu0 0.0
    %98 = vmatpush2.msra.mxu0 0.0
    %99 = vmatprep.subr.mxu0 0.0
    %100 = vmatpush2.msra.mxu0 0.0
    %101 = vmatprep.subr.mxu0 0.0
    %102 = vmatpush2.msra.mxu0 0.0
    %103 = vmatprep.subr.mxu0 0.0
    %104 = vmatpush2.msra.mxu0 0.0
    %105 = vmatprep.subr.mxu0 0.0
    %106 = vmatpush2.msra.mxu0 0.0
    %107 = vmatprep.subr.mxu0 0.0
    %108 = vmatpush2.msra.mxu0 0.0
    %109 = vmatprep.subr.mxu0 0.0
    %110 = vmatpush2.msra.mxu0 0.0
    %111 = vmatprep.subr.mxu0 0.0
    %112 = vmatpush2.msra.mxu0 0.0
    %113 = vmatprep.subr.mxu0 0.0
    %114 = vmatpush2.msra.mxu0 0.0
    %115 = vmatprep.mubr.f32.mxu0 0.0
    %116 = vmatmul.mubr.f32.gmra.mxu0 %v49
    %v117 = vpop.f32.mrf.mxu0
    %v118 = vadd.f32 %v36, %v117
    %v119 = vpop.f32.mrf.mxu0
    %120 = vdwg.mxu0
    %v121 = vmax.f32 %v118, 0.0
    %v123 = vsel %vm47, %v121, 0
    %125 = vmatprep.subr.mxu0 0.0
    %126 = vmatpush1.msra.mxu0 0.0
    %127 = vmatprep.subr.mxu0 0.0
    %128 = vmatpush1.msra.mxu0 0.0
    %129 = vmatprep.subr.mxu0 0.0
    %130 = vmatpush1.msra.mxu0 0.0
    %131 = vmatprep.subr.mxu0 0.0
    %132 = vmatpush1.msra.mxu0 0.0
    %133 = vmatprep.subr.mxu0 0.0
    %134 = vmatpush1.msra.mxu0 0.0
    %135 = vmatprep.subr.mxu0 0.0
    %136 = vmatpush1.msra.mxu0 0.0
    %137 = vmatprep.subr.mxu0 0.0
    %138 = vmatpush1.msra.mxu0 0.0
    %139 = vmatprep.subr.mxu0 0.0
    %140 = vmatpush1.msra.mxu0 0.0
    %141 = vmatprep.subr.mxu0 0.0
    %142 = vmatpush1.msra.mxu0 0.0
    %143 = vmatprep.subr.mxu0 0.0
    %144 = vmatpush1.msra.mxu0 0.0
    %145 = vmatprep.subr.mxu0 0.0
    %146 = vmatpush1.msra.mxu0 0.0
    %147 = vmatprep.subr.mxu0 0.0
    %148 = vmatpush1.msra.mxu0 0.0
    %149 = vmatprep.subr.mxu0 0.0
    %150 = vmatpush1.msra.mxu0 %v33
    %151 = vmatprep.subr.mxu0 0.0
    %152 = vmatpush1.msra.mxu0 %v32
    %153 = vmatprep.subr.mxu0 0.0
    %154 = vmatpush1.msra.mxu0 %v31
    %155 = vmatprep.subr.mxu0 0.0
    %156 = vmatpush1.msra.mxu0 %v30
    %157 = vmatprep.subr.mxu0 0.0
    %158 = vmatpush2.msra.mxu0 0.0
    %159 = vmatprep.subr.mxu0 0.0
    %160 = vmatpush2.msra.mxu0 0.0
    %161 = vmatprep.subr.mxu0 0.0
    %162 = vmatpush2.msra.mxu0 0.0
    %163 = vmatprep.subr.mxu0 0.0
    %164 = vmatpush2.msra.mxu0 0.0
    %165 = vmatprep.subr.mxu0 0.0
    %166 = vmatpush2.msra.mxu0 0.0
    %167 = vmatprep.subr.mxu0 0.0
    %168 = vmatpush2.msra.mxu0 0.0
    %169 = vmatprep.subr.mxu0 0.0
    %170 = vmatpush2.msra.mxu0 0.0
    %171 = vmatprep.subr.mxu0 0.0
    %172 = vmatpush2.msra.mxu0 0.0
    %173 = vmatprep.subr.mxu0 0.0
    %174 = vmatpush2.msra.mxu0 0.0
    %175 = vmatprep.subr.mxu0 0.0
    %176 = vmatpush2.msra.mxu0 0.0
    %177 = vmatprep.subr.mxu0 0.0
    %178 = vmatpush2.msra.mxu0 0.0
    %179 = vmatprep.subr.mxu0 0.0
    %180 = vmatpush2.msra.mxu0 0.0
    %181 = vmatprep.subr.mxu0 0.0
    %182 = vmatpush2.msra.mxu0 0.0
    %183 = vmatprep.subr.mxu0 0.0
    %184 = vmatpush2.msra.mxu0 0.0
    %185 = vmatprep.subr.mxu0 0.0
    %186 = vmatpush2.msra.mxu0 0.0
    %187 = vmatprep.subr.mxu0 0.0
    %188 = vmatpush2.msra.mxu0 0.0
    %189 = vmatprep.mubr.f32.mxu0 0.0
    %190 = vmatmul.mubr.f32.gmra.mxu0 %v123
    %v191 = vpop.f32.mrf.mxu0
    %v192 = vadd.f32 %v37, %v191
    %v193 = vpop.f32.mrf.mxu0
    %194 = vdwg.mxu0
    %vm195 = vcmp.gt.f32.partialorder %v192, 20.0
    %v196 = vmul.f32 %v192, 1.442695
    %v197 = vpow.pop %v196
    %v198 = vadd.f32 %v197, 1.0
    %v199 = vlog2.pop %v198
    %v200 = vmul.f32 %v199, 0.6931472
    %v201 = vmul.f32 -0.5, %v197
    %v202 = vadd.f32 %v201, 1.0
    %v203 = vmul.f32 %v202, %v197
    %v204 = vand.u32 2147483647, %v197
    %vm205 = vcmp.lt.f32.partialorder %v204, 0.0004427343
    %v206 = vsel %vm205, %v203, %v200
    %v207 = vsel %vm195, %v192, %v206
    %208 = vst [vmem:[#allocation5] sm:$0xff] %v207
    // Predicated region
    $region14: #{tpu_custom_call.1} parent=1 // pred_check
      _
    $region15: #{tpu_custom_call.1} parent=1 // pred_check_branch
      %210 = sbr.rel (0) target = $region17
    $region16: #{tpu_custom_call.1} parent=1 // pred_region
      %s212 = ssub.s32 128, 128
      %213 = vsyncadd [#allocation4], %s212
      %s215 = sshll.u32 [#allocation5], 4
      %s216 = int_to_ptr.vmem [resolvable:$true] %s215
      %218 = dma.vmem_to_hbm [thread:$0]  %s216, 128, %s2, [#allocation4]
    $region17: #{tpu_custom_call.1} parent=1 // pred_fallthru
      _
    // Predicated region
    $region18: #{tpu_custom_call.1} parent=1 // pred_check
      _
    $region19: #{tpu_custom_call.1} parent=1 // pred_check_branch
      %220 = sbr.rel (0) target = $region21
    $region20: #{tpu_custom_call.1} parent=1 // pred_region
      %221 = dma.done [#allocation4], 128
    $region21: #{tpu_custom_call.1} parent=1 // pred_fallthru
      _
    %222 = vsyncpa [#allocation3], 1
    %223 = vsyncpa [#allocation4], 1

</llo_original>
